<compile_context>
chip_gen: v6e
topology: v6e:2x2x1
jax: 0.10.0
libtpu: 0.0.40
codegen_flags: <defaults>
</compile_context>

<pallas_src>
import jax
import jax.numpy as jnp
from jax.experimental import pallas as pl
from jax.experimental.pallas import tpu as pltpu


def _round_up(v, m):
    return ((v + m - 1) // m) * m


def _gcn_layer1_kernel(a_ref, x_ref, w1_ref, b1_ref, h1_ref):
    # H1_block = relu((A_block @ X) @ W1 + b1)      (reassociated: contract over F, not H)
    ax = jnp.dot(a_ref[...], x_ref[...], preferred_element_type=jnp.float32)
    h1 = jnp.dot(ax.astype(jnp.bfloat16), w1_ref[...],
                 preferred_element_type=jnp.float32) + b1_ref[...]
    h1_ref[...] = jnp.maximum(h1, 0.0).astype(h1_ref.dtype)


def _gcn_layer2_pool_kernel(a_ref, h1_ref, w2_ref, b2_ref, p_ref, o_ref):
    # out += P[:, block] @ (A[block, :] @ H1 @ W2 + b2)     (row axis is a reduction)
    k = pl.program_id(0)

    @pl.when(k == 0)
    def _():
        o_ref[...] = jnp.zeros_like(o_ref)

    ah1 = jnp.dot(a_ref[...], h1_ref[...], preferred_element_type=jnp.float32)
    h2 = jnp.dot(ah1.astype(jnp.bfloat16), w2_ref[...],
                 preferred_element_type=jnp.float32) + b2_ref[...]
    o_ref[...] += jnp.dot(p_ref[...], h2, preferred_element_type=jnp.float32)


def graph_matching_forward(a_hat, x, w1, b1, w2, b2, pool, *, tile_m=None):
    n, f = x.shape
    h = w1.shape[1]
    g = pool.shape[0]

    # vreg / MXU friendly padded dims
    n_pad = _round_up(n, 128)
    f_pad = _round_up(f, 8)
    h_pad = _round_up(h, 128)
    g_pad = _round_up(g, 8)

    if tile_m is None:
        tile_m = next(t for t in (512, 256, 128) if n_pad % t == 0)
    num_blocks = n_pad // tile_m

    bf16 = jnp.bfloat16
    a_p = jnp.pad(a_hat, ((0, n_pad - n), (0, n_pad - n))).astype(bf16)
    x_p = jnp.pad(x, ((0, n_pad - n), (0, f_pad - f))).astype(bf16)
    w1_p = jnp.pad(w1, ((0, f_pad - f), (0, h_pad - h))).astype(bf16)
    b1_p = jnp.pad(b1.reshape(1, -1), ((0, 0), (0, h_pad - h))).astype(jnp.float32)
    w2_p = jnp.pad(w2, ((0, h_pad - h), (0, h_pad - h))).astype(bf16)
    b2_p = jnp.pad(b2.reshape(1, -1), ((0, 0), (0, h_pad - h))).astype(jnp.float32)
    p_p = jnp.pad(pool, ((0, g_pad - g), (0, n_pad - n))).astype(jnp.float32)

    # ---- layer 1: H1 = relu((A @ X) @ W1 + b1), row-tiled, parallel across cores ----
    cost1 = pl.CostEstimate(
        flops=2 * (n_pad * n_pad * f_pad + n_pad * f_pad * h_pad),
        transcendentals=0,
        bytes_accessed=2 * (n_pad * n_pad + n_pad * f_pad + f_pad * h_pad + n_pad * h_pad)
        + 4 * h_pad,
    )
    h1 = pl.pallas_call(
        _gcn_layer1_kernel,
        out_shape=jax.ShapeDtypeStruct((n_pad, h_pad), bf16),
        grid=(num_blocks,),
        in_specs=[
            pl.BlockSpec((tile_m, n_pad), lambda i: (i, 0)),   # A_hat row stripe
            pl.BlockSpec((n_pad, f_pad), lambda i: (0, 0)),    # X (full)
            pl.BlockSpec((f_pad, h_pad), lambda i: (0, 0)),    # W1
            pl.BlockSpec((1, h_pad), lambda i: (0, 0)),        # b1
        ],
        out_specs=pl.BlockSpec((tile_m, h_pad), lambda i: (i, 0)),
        compiler_params=pltpu.CompilerParams(dimension_semantics=("parallel",)),
        cost_estimate=cost1,
    )(a_p, x_p, w1_p, b1_p)

    # ---- layer 2 + mean pool: out = P @ (A @ H1 @ W2 + b2), row axis reduces into out ----
    cost2 = pl.CostEstimate(
        flops=2 * (n_pad * n_pad * h_pad + n_pad * h_pad * h_pad + g_pad * n_pad * h_pad),
        transcendentals=0,
        bytes_accessed=2 * (n_pad * n_pad + n_pad * h_pad + h_pad * h_pad)
        + 4 * (g_pad * n_pad + g_pad * h_pad + h_pad),
    )
    out_pad = pl.pallas_call(
        _gcn_layer2_pool_kernel,
        out_shape=jax.ShapeDtypeStruct((g_pad, h_pad), jnp.float32),
        grid=(num_blocks,),
        in_specs=[
            pl.BlockSpec((tile_m, n_pad), lambda k: (k, 0)),   # A_hat row stripe
            pl.BlockSpec((n_pad, h_pad), lambda k: (0, 0)),    # H1 (full)
            pl.BlockSpec((h_pad, h_pad), lambda k: (0, 0)),    # W2
            pl.BlockSpec((1, h_pad), lambda k: (0, 0)),        # b2
            pl.BlockSpec((g_pad, tile_m), lambda k: (0, k)),   # P column stripe
        ],
        out_specs=pl.BlockSpec((g_pad, h_pad), lambda k: (0, 0)),
        compiler_params=pltpu.CompilerParams(dimension_semantics=("arbitrary",)),
        cost_estimate=cost2,
    )(a_p, h1, w2_p, b2_p, p_p)

    return out_pad[:g, :h]


def build_normalized_adjacency(edge_index, num_nodes):
    """Dense equivalent of PyG gcn_norm with add_self_loops=True."""
    src = edge_index[0]
    dst = edge_index[1]
    a = jnp.zeros((num_nodes, num_nodes), jnp.float32)
    # A[target, source] = 1  (messages flow source -> target)
    a = a.at[dst, src].add(1.0)
    a = a + jnp.eye(num_nodes, dtype=jnp.float32)  # self loops
    deg = a.sum(axis=1)
    dinv = jnp.where(deg > 0, 1.0 / jnp.sqrt(deg), 0.0)
    return dinv[:, None] * a * dinv[None, :]


def build_mean_pool_matrix(batch, num_nodes, num_graphs):
    """P[g, n] = 1/|V_g| if batch[n] == g else 0."""
    onehot = (batch[None, :] == jnp.arange(num_graphs)[:, None]).astype(jnp.float32)
    counts = onehot.sum(axis=1, keepdims=True)
    return onehot / jnp.maximum(counts, 1.0)


def glorot(key, shape):
    fan_in, fan_out = shape
    limit = jnp.sqrt(6.0 / (fan_in + fan_out))
    return jax.random.uniform(key, shape, jnp.float32, -limit, limit)


if __name__ == "__main__":
    key = jax.random.PRNGKey(0)
    k_x, k_w1, k_b1, k_w2, k_b2 = jax.random.split(key, 5)

    num_nodes = 16
    num_node_features = 8
    hidden_dim = 32
    num_graphs = 2

    # node features
    x = jax.random.normal(k_x, (num_nodes, num_node_features), jnp.float32)

    # deterministic synthetic graph: two 8-node ring graphs (undirected edges both ways)
    ring = jnp.arange(8)
    src0 = ring
    dst0 = (ring + 1) % 8
    src = jnp.concatenate([src0, dst0, src0 + 8, dst0 + 8])
    dst = jnp.concatenate([dst0, src0, dst0 + 8, src0 + 8])
    edge_index = jnp.stack([src, dst]).astype(jnp.int32)   # [2, E]
    batch = jnp.concatenate([jnp.zeros(8, jnp.int32), jnp.ones(8, jnp.int32)])

    # parameters (deterministic init; GCNConv: weight [in, out], bias [out])
    w1 = glorot(k_w1, (num_node_features, hidden_dim))
    b1 = 0.1 * jax.random.normal(k_b1, (1, hidden_dim), jnp.float32)
    w2 = glorot(k_w2, (hidden_dim, hidden_dim))
    b2 = 0.1 * jax.random.normal(k_b2, (1, hidden_dim), jnp.float32)

    # graph-structure glue (plain JAX)
    a_hat = build_normalized_adjacency(edge_index, num_nodes)
    pool = build_mean_pool_matrix(batch, num_nodes, num_graphs)

    out = graph_matching_forward(a_hat, x, w1, b1, w2, b2, pool)
    out = jax.block_until_ready(out)

    # pure-JAX f32 reference check (bf16 matmul operands -> loosened tolerance)
    h1_ref = jnp.maximum(a_hat @ (x @ w1) + b1, 0.0)
    h2_ref = a_hat @ (h1_ref @ w2) + b2
    ref = pool @ h2_ref
    assert out.shape == (num_graphs, hidden_dim)
    assert jnp.allclose(out, ref, atol=5e-2, rtol=5e-2)

    print("KERNEL_OK")
</pallas_src>

<mosaic_0001>
module attributes {stable_mosaic.version = 11 : i64} {
  func.func @_gcn_layer1_kernel(%arg0: i32, %arg1: memref<128x128xbf16, #tpu.memory_space<vmem>>, %arg2: memref<128x8xbf16, #tpu.memory_space<vmem>>, %arg3: memref<8x128xbf16, #tpu.memory_space<vmem>>, %arg4: memref<1x128xf32, #tpu.memory_space<vmem>>, %arg5: memref<128x128xbf16, #tpu.memory_space<vmem>>) attributes {dimension_semantics = [#tpu.dimension_semantics<parallel>], iteration_bounds = array<i64: 1>, scalar_prefetch = 0 : i64, scratch_operands = 0 : i64, tpu.core_type = #tpu.core_type<tc>, window_params = [{transform_indices = @transform_0, window_bounds = array<i64: 128, 128>}, {pipeline_mode = #tpu.pipeline_mode<synchronous>, transform_indices = @transform_1, window_bounds = array<i64: 128, 8>}, {pipeline_mode = #tpu.pipeline_mode<synchronous>, transform_indices = @transform_2, window_bounds = array<i64: 8, 128>}, {pipeline_mode = #tpu.pipeline_mode<synchronous>, transform_indices = @transform_3, window_bounds = array<i64: 1, 128>}, {transform_indices = @transform_4, window_bounds = array<i64: 128, 128>}]} {
    %c0 = arith.constant 0 : index
    %c0_0 = arith.constant 0 : index
    %0 = vector.load %arg1[%c0, %c0_0] : memref<128x128xbf16, #tpu.memory_space<vmem>>, vector<128x128xbf16>
    %c0_1 = arith.constant 0 : index
    %c0_2 = arith.constant 0 : index
    %1 = vector.load %arg2[%c0_1, %c0_2] : memref<128x8xbf16, #tpu.memory_space<vmem>>, vector<128x8xbf16>
    %cst = arith.constant dense<0.000000e+00> : vector<128x8xf32>
    %2 = tpu.matmul %0, %1, %cst {dimension_numbers = #tpu.dot_dimension_numbers<[1], [0], [0], [1], [0, 0, 1, 1], [], []>} : vector<128x128xbf16>, vector<128x8xbf16>, vector<128x8xf32> -> vector<128x8xf32>
    %3 = arith.truncf %2 : vector<128x8xf32> to vector<128x8xbf16>
    %c0_3 = arith.constant 0 : index
    %c0_4 = arith.constant 0 : index
    %4 = vector.load %arg3[%c0_3, %c0_4] : memref<8x128xbf16, #tpu.memory_space<vmem>>, vector<8x128xbf16>
    %cst_5 = arith.constant dense<0.000000e+00> : vector<128x128xf32>
    %5 = tpu.matmul %3, %4, %cst_5 {dimension_numbers = #tpu.dot_dimension_numbers<[1], [0], [0], [1], [0, 0, 1, 1], [], []>} : vector<128x8xbf16>, vector<8x128xbf16>, vector<128x128xf32> -> vector<128x128xf32>
    %c0_6 = arith.constant 0 : index
    %c0_7 = arith.constant 0 : index
    %6 = vector.load %arg4[%c0_6, %c0_7] : memref<1x128xf32, #tpu.memory_space<vmem>>, vector<1x128xf32>
    %7 = vector.broadcast %6 : vector<1x128xf32> to vector<128x128xf32>
    %8 = arith.addf %5, %7 : vector<128x128xf32>
    %cst_8 = arith.constant 0.000000e+00 : f32
    %9 = vector.broadcast %cst_8 : f32 to vector<128x128xf32>
    %10 = arith.maximumf %8, %9 : vector<128x128xf32>
    %11 = arith.truncf %10 : vector<128x128xf32> to vector<128x128xbf16>
    %c0_9 = arith.constant 0 : index
    %c0_10 = arith.constant 0 : index
    %12 = vector.load %arg5[%c0_9, %c0_10] : memref<128x128xbf16, #tpu.memory_space<vmem>>, vector<128x128xbf16>
    tpu.vector_store %arg5[%c0_9, %c0_10], %11 {strides = array<i32>} : memref<128x128xbf16, #tpu.memory_space<vmem>>, vector<128x128xbf16>,
    return
  }
  func.func @transform_0(%arg0: i32) -> (i32, i32) {
    %c0_i32 = arith.constant 0 : i32
    %c0_i32_0 = arith.constant 0 : i32
    return %arg0, %c0_i32 : i32, i32
  }
  func.func @transform_1(%arg0: i32) -> (i32, i32) {
    %c0_i32 = arith.constant 0 : i32
    %c0_i32_0 = arith.constant 0 : i32
    %c0_i32_1 = arith.constant 0 : i32
    return %c0_i32, %c0_i32_0 : i32, i32
  }
  func.func @transform_2(%arg0: i32) -> (i32, i32) {
    %c0_i32 = arith.constant 0 : i32
    %c0_i32_0 = arith.constant 0 : i32
    %c0_i32_1 = arith.constant 0 : i32
    return %c0_i32, %c0_i32_0 : i32, i32
  }
  func.func @transform_3(%arg0: i32) -> (i32, i32) {
    %c0_i32 = arith.constant 0 : i32
    %c0_i32_0 = arith.constant 0 : i32
    %c0_i32_1 = arith.constant 0 : i32
    return %c0_i32, %c0_i32_0 : i32, i32
  }
  func.func @transform_4(%arg0: i32) -> (i32, i32) {
    %c0_i32 = arith.constant 0 : i32
    %c0_i32_0 = arith.constant 0 : i32
    return %arg0, %c0_i32 : i32, i32
  }
}

</mosaic_0001>

<llo_original>
// kernel: tpu_custom_call.1
$region0: #{tpu_custom_call.1}
  #allocation0 [shape = 'u32[]', space=smem, size = 0x4, offset = 0x4, fixed_abs, tag = 'smem constant byte address 0x4 - core index']
  #allocation1 [shape = 'u32[144,128]{1,0:T(1,128)}', space=vmem, size = 0x12000, scoped, tag = 'internal scratch']
  %s0 = inlined_call_operand.vmem [shape: bf16[128,128], index: 0, kind: input, shape index: {}]
  %s1 = inlined_call_operand.vmem [shape: bf16[128,8], index: 1, kind: input, shape index: {}]
  %s2 = inlined_call_operand.vmem [shape: bf16[8,128], index: 2, kind: input, shape index: {}]
  %s3 = inlined_call_operand.vmem [shape: f32[1,128], index: 3, kind: input, shape index: {}]
  %s4 = inlined_call_operand.hbm [shape: bf16[128,128], index: 4, kind: output, shape index: {}]
  %s5 = sld [smem:[#allocation0]]
  $region26: #{tpu_custom_call.1} parent=0
    _
  %s7 = ssub.s32 1, %s5
  %s8 = scalar_select 0, %s7, %s5
  $region1: #{tpu_custom_call.1} parent=0
    #allocation2 [shape = 'u8[32768]{0}', space=vmem, size = 0x8000, scoped, tag = 'output window, operand 0, single buffered']
    #allocation3 [shape = 's32[1]{0}', space=sflag, size = 0x4, scoped, tag = 'scoped memory for tpu_custom_call.1']
    %9 = vsyncpa [#allocation3], 0
    // Predicated region
    $region2: #{tpu_custom_call.1} parent=1 // pred_check
      _
    $region3: #{tpu_custom_call.1} parent=1 // pred_check_branch
      %11 = sbr.rel (0) target = $region5
    $region4: #{tpu_custom_call.1} parent=1 // pred_region
      _
    $region5: #{tpu_custom_call.1} parent=1 // pred_fallthru
      _
    // Predicated region
    $region6: #{tpu_custom_call.1} parent=1 // pred_check
      _
    $region7: #{tpu_custom_call.1} parent=1 // pred_check_branch
      %13 = sbr.rel (0) target = $region9
    $region8: #{tpu_custom_call.1} parent=1 // pred_region
      _
    $region9: #{tpu_custom_call.1} parent=1 // pred_fallthru
      _
    // Predicated region
    $region10: #{tpu_custom_call.1} parent=1 // pred_check
      _
    $region11: #{tpu_custom_call.1} parent=1 // pred_check_branch
      %15 = sbr.rel (0) target = $region13
    $region12: #{tpu_custom_call.1} parent=1 // pred_region
      _
    $region13: #{tpu_custom_call.1} parent=1 // pred_fallthru
      _
    // Predicated region
    $region14: #{tpu_custom_call.1} parent=1 // pred_check
      _
    $region15: #{tpu_custom_call.1} parent=1 // pred_check_branch
      %17 = sbr.rel (0) target = $region17
    $region16: #{tpu_custom_call.1} parent=1 // pred_region
      _
    $region17: #{tpu_custom_call.1} parent=1 // pred_fallthru
      _
    %v19 = vld [vmem:[%s0] sm:$0xf]
    %v20 = vld [vmem:[%s0 + $0x4] sm:$0xf]
    %v21 = vld [vmem:[%s0 + $0x8] sm:$0xf]
    %v22 = vld [vmem:[%s0 + $0xc] sm:$0xf]
    %v23 = vld [vmem:[%s0 + $0x10] sm:$0xf]
    %v24 = vld [vmem:[%s0 + $0x14] sm:$0xf]
    %v25 = vld [vmem:[%s0 + $0x18] sm:$0xf]
    %v26 = vld [vmem:[%s0 + $0x1c] sm:$0xf]
    %v27 = vld [vmem:[%s0 + $0x20] sm:$0xf]
    %v28 = vld [vmem:[%s0 + $0x24] sm:$0xf]
    %v29 = vld [vmem:[%s0 + $0x28] sm:$0xf]
    %v30 = vld [vmem:[%s0 + $0x2c] sm:$0xf]
    %v31 = vld [vmem:[%s0 + $0x30] sm:$0xf]
    %v32 = vld [vmem:[%s0 + $0x34] sm:$0xf]
    %v33 = vld [vmem:[%s0 + $0x38] sm:$0xf]
    %v34 = vld [vmem:[%s0 + $0x3c] sm:$0xf]
    %v35 = vld [vmem:[%s1] sm:$0xf]
    %v36 = vld [vmem:[%s1 + $0x4] sm:$0xf]
    %v37 = vld [vmem:[%s1 + $0x8] sm:$0xf]
    %v38 = vld [vmem:[%s1 + $0xc] sm:$0xf]
    %v39 = vld [vmem:[%s1 + $0x10] sm:$0xf]
    %v40 = vld [vmem:[%s1 + $0x14] sm:$0xf]
    %v41 = vld [vmem:[%s1 + $0x18] sm:$0xf]
    %v42 = vld [vmem:[%s1 + $0x1c] sm:$0xf]
    %v43 = vld [vmem:[%s1 + $0x20] sm:$0xf]
    %v44 = vld [vmem:[%s1 + $0x24] sm:$0xf]
    %v45 = vld [vmem:[%s1 + $0x28] sm:$0xf]
    %v46 = vld [vmem:[%s1 + $0x2c] sm:$0xf]
    %v47 = vld [vmem:[%s1 + $0x30] sm:$0xf]
    %v48 = vld [vmem:[%s1 + $0x34] sm:$0xf]
    %v49 = vld [vmem:[%s1 + $0x38] sm:$0xf]
    %v50 = vld [vmem:[%s1 + $0x3c] sm:$0xf]
    %v67 = vunpack.c.l.b16 %v19
    %v68 = vunpack.c.l.b16 %v20
    %v69 = vunpack.c.l.b16 %v21
    %v70 = vunpack.c.l.b16 %v22
    %v71 = vunpack.c.l.b16 %v23
    %v72 = vunpack.c.l.b16 %v24
    %v73 = vunpack.c.l.b16 %v25
    %v74 = vunpack.c.l.b16 %v26
    %v75 = vunpack.c.l.b16 %v27
    %v76 = vunpack.c.l.b16 %v28
    %v77 = vunpack.c.l.b16 %v29
    %v78 = vunpack.c.l.b16 %v30
    %v79 = vunpack.c.l.b16 %v31
    %v80 = vunpack.c.l.b16 %v32
    %v81 = vunpack.c.l.b16 %v33
    %v82 = vunpack.c.l.b16 %v34
    %v83 = vpack.c.b16 %v68, %v67
    %v84 = vpack.c.b16 %v70, %v69
    %v85 = vpack.c.b16 %v72, %v71
    %v86 = vpack.c.b16 %v74, %v73
    %v87 = vpack.c.b16 %v76, %v75
    %v88 = vpack.c.b16 %v78, %v77
    %v89 = vpack.c.b16 %v80, %v79
    %v90 = vpack.c.b16 %v82, %v81
    %v115 = vunpack.c.l.b16 %v35
    %v116 = vunpack.c.l.b16 %v36
    %v117 = vunpack.c.l.b16 %v37
    %v118 = vunpack.c.l.b16 %v38
    %v119 = vunpack.c.l.b16 %v39
    %v120 = vunpack.c.l.b16 %v40
    %v121 = vunpack.c.l.b16 %v41
    %v122 = vunpack.c.l.b16 %v42
    %v123 = vunpack.c.l.b16 %v43
    %v124 = vunpack.c.l.b16 %v44
    %v125 = vunpack.c.l.b16 %v45
    %v126 = vunpack.c.l.b16 %v46
    %v127 = vunpack.c.l.b16 %v47
    %v128 = vunpack.c.l.b16 %v48
    %v129 = vunpack.c.l.b16 %v49
    %v130 = vunpack.c.l.b16 %v50
    %v131 = vpack.c.b16 %v116, %v115
    %v132 = vpack.c.b16 %v118, %v117
    %v133 = vpack.c.b16 %v120, %v119
    %v134 = vpack.c.b16 %v122, %v121
    %v135 = vpack.c.b16 %v124, %v123
    %v136 = vpack.c.b16 %v126, %v125
    %v137 = vpack.c.b16 %v128, %v127
    %v138 = vpack.c.b16 %v130, %v129
    %147 = vmatprep.subr.bf16.mxu0 0
    %148 = vmatpush1.bf16.msra.mxu0 %v138
    %149 = vmatprep.subr.bf16.mxu0 0
    %150 = vmatpush1.bf16.msra.mxu0 %v137
    %151 = vmatprep.subr.bf16.mxu0 0
    %152 = vmatpush1.bf16.msra.mxu0 %v136
    %153 = vmatprep.subr.bf16.mxu0 0
    %154 = vmatpush1.bf16.msra.mxu0 %v135
    %155 = vmatprep.subr.bf16.mxu0 0
    %156 = vmatpush1.bf16.msra.mxu0 %v134
    %157 = vmatprep.subr.bf16.mxu0 0
    %158 = vmatpush1.bf16.msra.mxu0 %v133
    %159 = vmatprep.subr.bf16.mxu0 0
    %160 = vmatpush1.bf16.msra.mxu0 %v132
    %161 = vmatprep.subr.bf16.mxu0 0
    %162 = vmatpush1.bf16.msra.mxu0 %v131
    %163 = vmatprep.subr.bf16.mxu0 0
    %164 = vmatpush2.bf16.msra.mxu0 0
    %165 = vmatprep.subr.bf16.mxu0 0
    %166 = vmatpush2.bf16.msra.mxu0 0
    %167 = vmatprep.subr.bf16.mxu0 0
    %168 = vmatpush2.bf16.msra.mxu0 0
    %169 = vmatprep.subr.bf16.mxu0 0
    %170 = vmatpush2.bf16.msra.mxu0 0
    %171 = vmatprep.subr.bf16.mxu0 0
    %172 = vmatpush2.bf16.msra.mxu0 0
    %173 = vmatprep.subr.bf16.mxu0 0
    %174 = vmatpush2.bf16.msra.mxu0 0
    %175 = vmatprep.subr.bf16.mxu0 0
    %176 = vmatpush2.bf16.msra.mxu0 0
    %177 = vmatprep.subr.bf16.mxu0 0
    %178 = vmatpush2.bf16.msra.mxu0 0
    %179 = vmatprep.mubr.bf16.mxu0 0
    %180 = vmatmul.mubr.bf16.gmra.mxu0 %v83
    %v181 = vpop.f32.mrf.mxu0
    %v182 = vadd.f32 0.0, %v181
    %v183 = vpop.f32.mrf.mxu0
    %v184 = vpop.f32.mrf.mxu0
    %v185 = vadd.f32 0.0, %v184
    %v186 = vpop.f32.mrf.mxu0
    %187 = vmatprep.mubr.bf16.mxu0 0
    %188 = vmatmul.mubr.bf16.gmra.mxu0 %v84
    %v189 = vpop.f32.mrf.mxu0
    %v190 = vadd.f32 0.0, %v189
    %v191 = vpop.f32.mrf.mxu0
    %v192 = vpop.f32.mrf.mxu0
    %v193 = vadd.f32 0.0, %v192
    %v194 = vpop.f32.mrf.mxu0
    %195 = vmatprep.mubr.bf16.mxu0 0
    %196 = vmatmul.mubr.bf16.gmra.mxu0 %v85
    %v197 = vpop.f32.mrf.mxu0
    %v198 = vadd.f32 0.0, %v197
    %v199 = vpop.f32.mrf.mxu0
    %v200 = vpop.f32.mrf.mxu0
    %v201 = vadd.f32 0.0, %v200
    %v202 = vpop.f32.mrf.mxu0
    %203 = vmatprep.mubr.bf16.mxu0 0
    %204 = vmatmul.mubr.bf16.gmra.mxu0 %v86
    %v205 = vpop.f32.mrf.mxu0
    %v206 = vadd.f32 0.0, %v205
    %v207 = vpop.f32.mrf.mxu0
    %v208 = vpop.f32.mrf.mxu0
    %v209 = vadd.f32 0.0, %v208
    %v210 = vpop.f32.mrf.mxu0
    %211 = vmatprep.mubr.bf16.mxu0 0
    %212 = vmatmul.mubr.bf16.gmra.mxu0 %v87
    %v213 = vpop.f32.mrf.mxu0
    %v214 = vadd.f32 0.0, %v213
    %v215 = vpop.f32.mrf.mxu0
    %v216 = vpop.f32.mrf.mxu0
    %v217 = vadd.f32 0.0, %v216
    %v218 = vpop.f32.mrf.mxu0
    %219 = vmatprep.mubr.bf16.mxu0 0
    %220 = vmatmul.mubr.bf16.gmra.mxu0 %v88
    %v221 = vpop.f32.mrf.mxu0
    %v222 = vadd.f32 0.0, %v221
    %v223 = vpop.f32.mrf.mxu0
    %v224 = vpop.f32.mrf.mxu0
    %v225 = vadd.f32 0.0, %v224
    %v226 = vpop.f32.mrf.mxu0
    %227 = vmatprep.mubr.bf16.mxu0 0
    %228 = vmatmul.mubr.bf16.gmra.mxu0 %v89
    %v229 = vpop.f32.mrf.mxu0
    %v230 = vadd.f32 0.0, %v229
    %v231 = vpop.f32.mrf.mxu0
    %v232 = vpop.f32.mrf.mxu0
    %v233 = vadd.f32 0.0, %v232
    %v234 = vpop.f32.mrf.mxu0
    %235 = vmatprep.mubr.bf16.mxu0 0
    %236 = vmatmul.mubr.bf16.gmra.mxu0 %v90
    %v237 = vpop.f32.mrf.mxu0
    %v238 = vadd.f32 0.0, %v237
    %v239 = vpop.f32.mrf.mxu0
    %v240 = vpop.f32.mrf.mxu0
    %v241 = vadd.f32 0.0, %v240
    %v242 = vpop.f32.mrf.mxu0
    %243 = vdwg.mxu0
    %v244 = vpack.c.bf16 %v185, %v182
    %v245 = vpack.c.bf16 %v193, %v190
    %v246 = vpack.c.bf16 %v201, %v198
    %v247 = vpack.c.bf16 %v209, %v206
    %v248 = vpack.c.bf16 %v217, %v214
    %v249 = vpack.c.bf16 %v225, %v222
    %v250 = vpack.c.bf16 %v233, %v230
    %v251 = vpack.c.bf16 %v241, %v238
    %v252 = vld [vmem:[%s2] sm:$0xf]
    %v253 = vld [vmem:[%s3] sm:$0x1]
    %v255 = vlaneseq
    %v256 = vshrl.u32 %v255, 7
    %v257 = vsub.s32 0, %v256
    %v258 = vrot.slane %v253, %v257
    %vm260 = vcmask 64512
    %v262 = vsel %vm260, %v244, 0
    %v265 = vsel %vm260, %v245, 0
    %v268 = vsel %vm260, %v246, 0
    %v271 = vsel %vm260, %v247, 0
    %v274 = vsel %vm260, %v248, 0
    %v277 = vsel %vm260, %v249, 0
    %v280 = vsel %vm260, %v250, 0
    %v283 = vsel %vm260, %v251, 0
    %vm285 = vcmask 1043456
    %v287 = vsel %vm285, %v252, 0
    %289 = vmatprep.subr.bf16.mxu0 0
    %290 = vmatpush1.bf16.msra.mxu0 0
    %291 = vmatprep.subr.bf16.mxu0 0
    %292 = vmatpush1.bf16.msra.mxu0 0
    %293 = vmatprep.subr.bf16.mxu0 0
    %294 = vmatpush1.bf16.msra.mxu0 0
    %295 = vmatprep.subr.bf16.mxu0 0
    %296 = vmatpush1.bf16.msra.mxu0 0
    %297 = vmatprep.subr.bf16.mxu0 0
    %298 = vmatpush1.bf16.msra.mxu0 0
    %299 = vmatprep.subr.bf16.mxu0 0
    %300 = vmatpush1.bf16.msra.mxu0 0
    %301 = vmatprep.subr.bf16.mxu0 0
    %302 = vmatpush1.bf16.msra.mxu0 0
    %303 = vmatprep.subr.bf16.mxu0 0
    %304 = vmatpush1.bf16.msra.mxu0 %v287
    %305 = vmatprep.subr.bf16.mxu0 0
    %306 = vmatpush2.bf16.msra.mxu0 0
    %307 = vmatprep.subr.bf16.mxu0 0
    %308 = vmatpush2.bf16.msra.mxu0 0
    %309 = vmatprep.subr.bf16.mxu0 0
    %310 = vmatpush2.bf16.msra.mxu0 0
    %311 = vmatprep.subr.bf16.mxu0 0
    %312 = vmatpush2.bf16.msra.mxu0 0
    %313 = vmatprep.subr.bf16.mxu0 0
    %314 = vmatpush2.bf16.msra.mxu0 0
    %315 = vmatprep.subr.bf16.mxu0 0
    %316 = vmatpush2.bf16.msra.mxu0 0
    %317 = vmatprep.subr.bf16.mxu0 0
    %318 = vmatpush2.bf16.msra.mxu0 0
    %319 = vmatprep.subr.bf16.mxu0 0
    %320 = vmatpush2.bf16.msra.mxu0 0
    %321 = vmatprep.mubr.bf16.mxu0 0
    %322 = vmatmul.mubr.bf16.gmra.mxu0 %v262
    %v323 = vpop.f32.mrf.mxu0
    %v324 = vadd.f32 %v258, %v323
    %v325 = vpop.f32.mrf.mxu0
    %v326 = vpop.f32.mrf.mxu0
    %v327 = vadd.f32 %v258, %v326
    %v328 = vpop.f32.mrf.mxu0
    %329 = vmatprep.mubr.bf16.mxu0 0
    %330 = vmatmul.mubr.bf16.gmra.mxu0 %v265
    %v331 = vpop.f32.mrf.mxu0
    %v332 = vadd.f32 %v258, %v331
    %v333 = vpop.f32.mrf.mxu0
    %v334 = vpop.f32.mrf.mxu0
    %v335 = vadd.f32 %v258, %v334
    %v336 = vpop.f32.mrf.mxu0
    %337 = vmatprep.mubr.bf16.mxu0 0
    %338 = vmatmul.mubr.bf16.gmra.mxu0 %v268
    %v339 = vpop.f32.mrf.mxu0
    %v340 = vadd.f32 %v258, %v339
    %v341 = vpop.f32.mrf.mxu0
    %v342 = vpop.f32.mrf.mxu0
    %v343 = vadd.f32 %v258, %v342
    %v344 = vpop.f32.mrf.mxu0
    %345 = vmatprep.mubr.bf16.mxu0 0
    %346 = vmatmul.mubr.bf16.gmra.mxu0 %v271
    %v347 = vpop.f32.mrf.mxu0
    %v348 = vadd.f32 %v258, %v347
    %v349 = vpop.f32.mrf.mxu0
    %v350 = vpop.f32.mrf.mxu0
    %v351 = vadd.f32 %v258, %v350
    %v352 = vpop.f32.mrf.mxu0
    %353 = vmatprep.mubr.bf16.mxu0 0
    %354 = vmatmul.mubr.bf16.gmra.mxu0 %v274
    %v355 = vpop.f32.mrf.mxu0
    %v356 = vadd.f32 %v258, %v355
    %v357 = vpop.f32.mrf.mxu0
    %v358 = vpop.f32.mrf.mxu0
    %v359 = vadd.f32 %v258, %v358
    %v360 = vpop.f32.mrf.mxu0
    %361 = vmatprep.mubr.bf16.mxu0 0
    %362 = vmatmul.mubr.bf16.gmra.mxu0 %v277
    %v363 = vpop.f32.mrf.mxu0
    %v364 = vadd.f32 %v258, %v363
    %v365 = vpop.f32.mrf.mxu0
    %v366 = vpop.f32.mrf.mxu0
    %v367 = vadd.f32 %v258, %v366
    %v368 = vpop.f32.mrf.mxu0
    %369 = vmatprep.mubr.bf16.mxu0 0
    %370 = vmatmul.mubr.bf16.gmra.mxu0 %v280
    %v371 = vpop.f32.mrf.mxu0
    %v372 = vadd.f32 %v258, %v371
    %v373 = vpop.f32.mrf.mxu0
    %v374 = vpop.f32.mrf.mxu0
    %v375 = vadd.f32 %v258, %v374
    %v376 = vpop.f32.mrf.mxu0
    %377 = vmatprep.mubr.bf16.mxu0 0
    %378 = vmatmul.mubr.bf16.gmra.mxu0 %v283
    %v379 = vpop.f32.mrf.mxu0
    %v380 = vadd.f32 %v258, %v379
    %v381 = vpop.f32.mrf.mxu0
    %v382 = vpop.f32.mrf.mxu0
    %v383 = vadd.f32 %v258, %v382
    %v384 = vpop.f32.mrf.mxu0
    %385 = vdwg.mxu0
    %v386 = vmax.f32 %v324, 0.0
    %v387 = vmax.f32 %v327, 0.0
    %v388 = vmax.f32 %v332, 0.0
    %v389 = vmax.f32 %v335, 0.0
    %v390 = vmax.f32 %v340, 0.0
    %v391 = vmax.f32 %v343, 0.0
    %v392 = vmax.f32 %v348, 0.0
    %v393 = vmax.f32 %v351, 0.0
    %v394 = vmax.f32 %v356, 0.0
    %v395 = vmax.f32 %v359, 0.0
    %v396 = vmax.f32 %v364, 0.0
    %v397 = vmax.f32 %v367, 0.0
    %v398 = vmax.f32 %v372, 0.0
    %v399 = vmax.f32 %v375, 0.0
    %v400 = vmax.f32 %v380, 0.0
    %v401 = vmax.f32 %v383, 0.0
    %v402 = vpack.c.bf16 %v387, %v386
    %v403 = vpack.c.bf16 %v389, %v388
    %v404 = vpack.c.bf16 %v391, %v390
    %v405 = vpack.c.bf16 %v393, %v392
    %v406 = vpack.c.bf16 %v395, %v394
    %v407 = vpack.c.bf16 %v397, %v396
    %v408 = vpack.c.bf16 %v399, %v398
    %v409 = vpack.c.bf16 %v401, %v400
    %v418 = vunpack.c.l.b16 %v402
    %v419 = vunpack.c.h.b16 %v402
    %v420 = vunpack.c.l.b16 %v403
    %v421 = vunpack.c.h.b16 %v403
    %v422 = vunpack.c.l.b16 %v404
    %v423 = vunpack.c.h.b16 %v404
    %v424 = vunpack.c.l.b16 %v405
    %v425 = vunpack.c.h.b16 %v405
    %v426 = vunpack.c.l.b16 %v406
    %v427 = vunpack.c.h.b16 %v406
    %v428 = vunpack.c.l.b16 %v407
    %v429 = vunpack.c.h.b16 %v407
    %v430 = vunpack.c.l.b16 %v408
    %v431 = vunpack.c.h.b16 %v408
    %v432 = vunpack.c.l.b16 %v409
    %v433 = vunpack.c.h.b16 %v409
    %v434 = vpack.c.b16 %v418, %v418
    %v435 = vpack.c.b16 %v419, %v419
    %v436 = vpack.c.b16 %v420, %v420
    %v437 = vpack.c.b16 %v421, %v421
    %v438 = vpack.c.b16 %v422, %v422
    %v439 = vpack.c.b16 %v423, %v423
    %v440 = vpack.c.b16 %v424, %v424
    %v441 = vpack.c.b16 %v425, %v425
    %v442 = vpack.c.b16 %v426, %v426
    %v443 = vpack.c.b16 %v427, %v427
    %v444 = vpack.c.b16 %v428, %v428
    %v445 = vpack.c.b16 %v429, %v429
    %v446 = vpack.c.b16 %v430, %v430
    %v447 = vpack.c.b16 %v431, %v431
    %v448 = vpack.c.b16 %v432, %v432
    %v449 = vpack.c.b16 %v433, %v433
    %466 = vst [vmem:[#allocation2] sm:$0xf] %v434
    %467 = vst [vmem:[#allocation2 + $0x4] sm:$0xf] %v435
    %468 = vst [vmem:[#allocation2 + $0x8] sm:$0xf] %v436
    %469 = vst [vmem:[#allocation2 + $0xc] sm:$0xf] %v437
    %470 = vst [vmem:[#allocation2 + $0x10] sm:$0xf] %v438
    %471 = vst [vmem:[#allocation2 + $0x14] sm:$0xf] %v439
    %472 = vst [vmem:[#allocation2 + $0x18] sm:$0xf] %v440
    %473 = vst [vmem:[#allocation2 + $0x1c] sm:$0xf] %v441
    %474 = vst [vmem:[#allocation2 + $0x20] sm:$0xf] %v442
    %475 = vst [vmem:[#allocation2 + $0x24] sm:$0xf] %v443
    %476 = vst [vmem:[#allocation2 + $0x28] sm:$0xf] %v444
    %477 = vst [vmem:[#allocation2 + $0x2c] sm:$0xf] %v445
    %478 = vst [vmem:[#allocation2 + $0x30] sm:$0xf] %v446
    %479 = vst [vmem:[#allocation2 + $0x34] sm:$0xf] %v447
    %480 = vst [vmem:[#allocation2 + $0x38] sm:$0xf] %v448
    %481 = vst [vmem:[#allocation2 + $0x3c] sm:$0xf] %v449
    // Predicated region
    $region18: #{tpu_custom_call.1} parent=1 // pred_check
      _
    $region19: #{tpu_custom_call.1} parent=1 // pred_check_branch
      %483 = sbr.rel (0) target = $region21
    $region20: #{tpu_custom_call.1} parent=1 // pred_region
      %s485 = ssub.s32 1024, 1024
      %486 = vsyncadd [#allocation3], %s485
      %s487 = sshll.u32 [#allocation2], 4
      %s488 = int_to_ptr.vmem [resolvable:$true] %s487
      %493 = dma.vmem_to_hbm [thread:$0]  %s488, 1024, %s4, [#allocation3], 64, 64, 4
    $region21: #{tpu_custom_call.1} parent=1 // pred_fallthru
      _
    // Predicated region
    $region22: #{tpu_custom_call.1} parent=1 // pred_check
      _
    $region23: #{tpu_custom_call.1} parent=1 // pred_check_branch
      %495 = sbr.rel (0) target = $region25
    $region24: #{tpu_custom_call.1} parent=1 // pred_region
      %496 = dma.done [#allocation3], 1024
    $region25: #{tpu_custom_call.1} parent=1 // pred_fallthru
      _
    %497 = vsyncpa [#allocation3], 1

</llo_original>
